<compile_context>
chip_gen: v7x
topology: tpu7x:2x2x1
jax: 0.10.0
libtpu: 0.0.40
codegen_flags: <defaults>
</compile_context>

<pallas_src>
import functools

import jax
import jax.numpy as jnp
import numpy as np
from jax.experimental import pallas as pl
from jax.experimental.pallas import tpu as pltpu

VMEM = pltpu.MemorySpace.VMEM
SMEM = pltpu.MemorySpace.SMEM


# ----------------------------------------------------------------------------
# Fused kernel: embedding lookup + road projection + fc1 + fc2 + out_fc
# ----------------------------------------------------------------------------
def _value_net_kernel(t_ref,                      # SMEM (1,) int32 : current_time
                      emb_ref,                    # (time_num, E_t)
                      road_ref,                   # (1, R)
                      wrf_ref, brf_ref,           # (R, E_r), (1, E_r)
                      w1t_ref, w1r_ref, b1_ref,   # (E_t, F1), (E_r, F1), (1, F1)
                      w2_ref, b2_ref,             # (F1, F2), (1, F2)
                      wout_ref, bout_ref,         # (1, F2), (1, 1)
                      out_ref):                   # (1, 1)
    t = t_ref[0]
    time_emb = emb_ref[pl.ds(t, 1), :]            # (1, E_t) dynamic row gather

    # road_freq_fc
    road_emb = (jnp.dot(road_ref[...], wrf_ref[...],
                        preferred_element_type=jnp.float32) + brf_ref[...])   # (1, E_r)

    # fc1 over the (virtual) concat [time_emb, road_emb]: two matmuls, one sum
    h1 = jnp.maximum(
        jnp.dot(time_emb, w1t_ref[...], preferred_element_type=jnp.float32)
        + jnp.dot(road_emb, w1r_ref[...], preferred_element_type=jnp.float32)
        + b1_ref[...],
        0.0)                                                                   # (1, F1)

    # fc2
    h2 = jnp.maximum(
        jnp.dot(h1, w2_ref[...], preferred_element_type=jnp.float32) + b2_ref[...],
        0.0)                                                                   # (1, F2)

    # out_fc: N=1 matmul replaced with a VPU multiply + lane reduce
    v = jnp.sum(h2 * wout_ref[...], axis=1, keepdims=True) + bout_ref[...]     # (1, 1)
    out_ref[...] = jnp.maximum(v, 0.0)


def value_network_forward(current_time, road_freq, params):
    """current_time: int32 (1,);  road_freq: float32 (R,).  Returns (1,)."""
    road_2d = road_freq.reshape(1, -1).astype(jnp.float32)
    out = pl.pallas_call(
        _value_net_kernel,
        out_shape=jax.ShapeDtypeStruct((1, 1), jnp.float32),
        in_specs=[
            pl.BlockSpec(memory_space=SMEM),      # current_time (scalar index)
            pl.BlockSpec(memory_space=VMEM),      # embedding table
            pl.BlockSpec(memory_space=VMEM),      # road_freq
            pl.BlockSpec(memory_space=VMEM),      # wrf_T
            pl.BlockSpec(memory_space=VMEM),      # brf
            pl.BlockSpec(memory_space=VMEM),      # w1_time_T
            pl.BlockSpec(memory_space=VMEM),      # w1_road_T
            pl.BlockSpec(memory_space=VMEM),      # b1
            pl.BlockSpec(memory_space=VMEM),      # w2_T
            pl.BlockSpec(memory_space=VMEM),      # b2
            pl.BlockSpec(memory_space=VMEM),      # wout (row)
            pl.BlockSpec(memory_space=VMEM),      # bout
        ],
        out_specs=pl.BlockSpec(memory_space=VMEM),
    )(current_time.astype(jnp.int32), params["emb"], road_2d,
      params["wrf_T"], params["brf"],
      params["w1t_T"], params["w1r_T"], params["b1"],
      params["w2_T"], params["b2"],
      params["wout_row"], params["bout"])
    return out.reshape(1)   # matches PyTorch .squeeze(1) on a (1,1) output


# ----------------------------------------------------------------------------
# Pure-JAX reference (sanity check of the kernel)
# ----------------------------------------------------------------------------
def reference_forward(current_time, road_freq, params):
    time_emb = params["emb"][current_time[0]]                        # (E_t,)
    road_emb = road_freq @ params["wrf_T"] + params["brf"][0]        # (E_r,)
    x = jnp.concatenate([time_emb, road_emb])                        # (E_t+E_r,)
    w1 = jnp.concatenate([params["w1t_T"], params["w1r_T"]], axis=0)
    h1 = jnp.maximum(x @ w1 + params["b1"][0], 0.0)
    h2 = jnp.maximum(h1 @ params["w2_T"] + params["b2"][0], 0.0)
    v = jnp.maximum(jnp.sum(h2 * params["wout_row"][0]) + params["bout"][0, 0], 0.0)
    return jnp.reshape(v, (1,))


# ----------------------------------------------------------------------------
# Deterministic parameter construction (PyTorch-like init)
# ----------------------------------------------------------------------------
def make_params(key, cfg):
    E_t = cfg["time_emb_size"]
    E_r = cfg["road_freq_emb_size"]
    R = cfg["road_freq_size"]
    F1 = cfg["fc1_size"]
    F2 = cfg["fc2_size"]

    keys = jax.random.split(key, 12)
    u = lambda kk, shape, sc: jax.random.uniform(kk, shape, jnp.float32, -sc, sc)

    # Embedding: N(0,1), padding_idx row zeroed (PyTorch behavior)
    emb = jax.random.normal(keys[0], (cfg["time_num"], E_t), jnp.float32)
    emb = emb.at[cfg["time_pad"]].set(0.0)

    params = {
        "emb": emb,
        # road_freq_fc: Linear(R -> E_r), stored transposed
        "wrf_T": u(keys[1], (R, E_r), 1.0 / np.sqrt(R)),
        "brf": u(keys[2], (1, E_r), 1.0 / np.sqrt(R)),
        # fc1: Linear(E_t + E_r -> F1), stored transposed and split by input block
        "w1t_T": u(keys[3], (E_t, F1), 1.0 / np.sqrt(E_t + E_r)),
        "w1r_T": u(keys[4], (E_r, F1), 1.0 / np.sqrt(E_t + E_r)),
        "b1": u(keys[5], (1, F1), 1.0 / np.sqrt(E_t + E_r)),
        # fc2: Linear(F1 -> F2), stored transposed
        "w2_T": u(keys[6], (F1, F2), 1.0 / np.sqrt(F1)),
        "b2": u(keys[7], (1, F2), 1.0 / np.sqrt(F1)),
        # out_fc: Linear(F2 -> 1), stored as a row so it feeds a VPU reduce
        "wout_row": u(keys[8], (1, F2), 1.0 / np.sqrt(F2)),
        "bout": u(keys[9], (1, 1), 1.0 / np.sqrt(F2)),
    }
    return params


if __name__ == "__main__":
    cfg = dict(time_num=24, time_pad=0, time_emb_size=8,
               road_freq_size=64, road_freq_emb_size=32,
               fc1_size=64, fc2_size=32)

    root = jax.random.PRNGKey(0)
    k_par, k_road = jax.random.split(root, 2)

    params = make_params(k_par, cfg)
    current_time = jnp.array([5], dtype=jnp.int32)
    road_freq = jax.random.normal(k_road, (cfg["road_freq_size"],), jnp.float32)

    value = value_network_forward(current_time, road_freq, params)
    value = jax.block_until_ready(value)

    value_ref = reference_forward(current_time, road_freq, params)
    np.testing.assert_allclose(np.asarray(value), np.asarray(value_ref),
                               rtol=1e-4, atol=1e-4)

    # also exercise the padding_idx path (embedding row is all zeros)
    value_pad = jax.block_until_ready(
        value_network_forward(jnp.array([cfg["time_pad"]], jnp.int32), road_freq, params))
    value_pad_ref = reference_forward(jnp.array([cfg["time_pad"]], jnp.int32), road_freq, params)
    np.testing.assert_allclose(np.asarray(value_pad), np.asarray(value_pad_ref),
                               rtol=1e-4, atol=1e-4)

    print("KERNEL_OK")
</pallas_src>

<mosaic_0001>
module attributes {stable_mosaic.version = 11 : i64} {
  func.func @_value_net_kernel(%arg0: memref<1xi32, #tpu.memory_space<smem>>, %arg1: memref<24x8xf32, #tpu.memory_space<vmem>>, %arg2: memref<1x64xf32, #tpu.memory_space<vmem>>, %arg3: memref<64x32xf32, #tpu.memory_space<vmem>>, %arg4: memref<1x32xf32, #tpu.memory_space<vmem>>, %arg5: memref<8x64xf32, #tpu.memory_space<vmem>>, %arg6: memref<32x64xf32, #tpu.memory_space<vmem>>, %arg7: memref<1x64xf32, #tpu.memory_space<vmem>>, %arg8: memref<64x32xf32, #tpu.memory_space<vmem>>, %arg9: memref<1x32xf32, #tpu.memory_space<vmem>>, %arg10: memref<1x32xf32, #tpu.memory_space<vmem>>, %arg11: memref<1x1xf32, #tpu.memory_space<vmem>>, %arg12: memref<1x1xf32, #tpu.memory_space<vmem>>) attributes {dimension_semantics = [], scalar_prefetch = 0 : i64, scratch_operands = 0 : i64, tpu.core_type = #tpu.core_type<tc>} {
    %c0 = arith.constant 0 : index
    %0 = memref.load %arg0[%c0] : memref<1xi32, #tpu.memory_space<smem>>
    %1 = arith.index_cast %0 : i32 to index
    %c0_0 = arith.constant 0 : index
    %2 = vector.load %arg1[%1, %c0_0] : memref<24x8xf32, #tpu.memory_space<vmem>>, vector<1x8xf32>
    %c0_1 = arith.constant 0 : index
    %c0_2 = arith.constant 0 : index
    %3 = vector.load %arg2[%c0_1, %c0_2] : memref<1x64xf32, #tpu.memory_space<vmem>>, vector<1x64xf32>
    %c0_3 = arith.constant 0 : index
    %c0_4 = arith.constant 0 : index
    %4 = vector.load %arg3[%c0_3, %c0_4] : memref<64x32xf32, #tpu.memory_space<vmem>>, vector<64x32xf32>
    %cst = arith.constant dense<0.000000e+00> : vector<1x32xf32>
    %5 = tpu.matmul %3, %4, %cst {dimension_numbers = #tpu.dot_dimension_numbers<[1], [0], [0], [1], [0, 0, 1, 1], [], []>} : vector<1x64xf32>, vector<64x32xf32>, vector<1x32xf32> -> vector<1x32xf32>
    %c0_5 = arith.constant 0 : index
    %c0_6 = arith.constant 0 : index
    %6 = vector.load %arg4[%c0_5, %c0_6] : memref<1x32xf32, #tpu.memory_space<vmem>>, vector<1x32xf32>
    %7 = arith.addf %5, %6 : vector<1x32xf32>
    %c0_7 = arith.constant 0 : index
    %c0_8 = arith.constant 0 : index
    %8 = vector.load %arg5[%c0_7, %c0_8] : memref<8x64xf32, #tpu.memory_space<vmem>>, vector<8x64xf32>
    %cst_9 = arith.constant dense<0.000000e+00> : vector<1x64xf32>
    %9 = tpu.matmul %2, %8, %cst_9 {dimension_numbers = #tpu.dot_dimension_numbers<[1], [0], [0], [1], [0, 0, 1, 1], [], []>} : vector<1x8xf32>, vector<8x64xf32>, vector<1x64xf32> -> vector<1x64xf32>
    %c0_10 = arith.constant 0 : index
    %c0_11 = arith.constant 0 : index
    %10 = vector.load %arg6[%c0_10, %c0_11] : memref<32x64xf32, #tpu.memory_space<vmem>>, vector<32x64xf32>
    %cst_12 = arith.constant dense<0.000000e+00> : vector<1x64xf32>
    %11 = tpu.matmul %7, %10, %cst_12 {dimension_numbers = #tpu.dot_dimension_numbers<[1], [0], [0], [1], [0, 0, 1, 1], [], []>} : vector<1x32xf32>, vector<32x64xf32>, vector<1x64xf32> -> vector<1x64xf32>
    %12 = arith.addf %9, %11 : vector<1x64xf32>
    %c0_13 = arith.constant 0 : index
    %c0_14 = arith.constant 0 : index
    %13 = vector.load %arg7[%c0_13, %c0_14] : memref<1x64xf32, #tpu.memory_space<vmem>>, vector<1x64xf32>
    %14 = arith.addf %12, %13 : vector<1x64xf32>
    %cst_15 = arith.constant 0.000000e+00 : f32
    %15 = vector.broadcast %cst_15 : f32 to vector<1x64xf32>
    %16 = arith.maximumf %14, %15 : vector<1x64xf32>
    %c0_16 = arith.constant 0 : index
    %c0_17 = arith.constant 0 : index
    %17 = vector.load %arg8[%c0_16, %c0_17] : memref<64x32xf32, #tpu.memory_space<vmem>>, vector<64x32xf32>
    %cst_18 = arith.constant dense<0.000000e+00> : vector<1x32xf32>
    %18 = tpu.matmul %16, %17, %cst_18 {dimension_numbers = #tpu.dot_dimension_numbers<[1], [0], [0], [1], [0, 0, 1, 1], [], []>} : vector<1x64xf32>, vector<64x32xf32>, vector<1x32xf32> -> vector<1x32xf32>
    %c0_19 = arith.constant 0 : index
    %c0_20 = arith.constant 0 : index
    %19 = vector.load %arg9[%c0_19, %c0_20] : memref<1x32xf32, #tpu.memory_space<vmem>>, vector<1x32xf32>
    %20 = arith.addf %18, %19 : vector<1x32xf32>
    %cst_21 = arith.constant 0.000000e+00 : f32
    %21 = vector.broadcast %cst_21 : f32 to vector<1x32xf32>
    %22 = arith.maximumf %20, %21 : vector<1x32xf32>
    %c0_22 = arith.constant 0 : index
    %c0_23 = arith.constant 0 : index
    %23 = vector.load %arg10[%c0_22, %c0_23] : memref<1x32xf32, #tpu.memory_space<vmem>>, vector<1x32xf32>
    %24 = arith.mulf %22, %23 : vector<1x32xf32>
    %cst_24 = arith.constant dense<0.000000e+00> : vector<1xf32>
    %25 = vector.multi_reduction <add>, %24, %cst_24 [1] : vector<1x32xf32> to vector<1xf32>
    %26 = vector.shape_cast %25 : vector<1xf32> to vector<1x1xf32>
    %c0_25 = arith.constant 0 : index
    %c0_26 = arith.constant 0 : index
    %27 = vector.load %arg11[%c0_25, %c0_26] : memref<1x1xf32, #tpu.memory_space<vmem>>, vector<1x1xf32>
    %28 = arith.addf %26, %27 : vector<1x1xf32>
    %cst_27 = arith.constant 0.000000e+00 : f32
    %29 = vector.broadcast %cst_27 : f32 to vector<1x1xf32>
    %30 = arith.maximumf %28, %29 : vector<1x1xf32>
    %c0_28 = arith.constant 0 : index
    %c0_29 = arith.constant 0 : index
    %31 = vector.load %arg12[%c0_28, %c0_29] : memref<1x1xf32, #tpu.memory_space<vmem>>, vector<1x1xf32>
    tpu.vector_store %arg12[%c0_28, %c0_29], %30 {strides = array<i32>} : memref<1x1xf32, #tpu.memory_space<vmem>>, vector<1x1xf32>,
    return
  }
}

</mosaic_0001>

<llo_original>
// kernel: tpu_custom_call.1
$region0: #{tpu_custom_call.1}
  #allocation0 [shape = 'u32[]', space=smem, size = 0x4, offset = 0x4, fixed_abs, tag = 'smem constant byte address 0x4 - core index']
  #allocation1 [shape = 'u32[144,128]{1,0:T(1,128)}', space=vmem, size = 0x12000, scoped, tag = 'internal scratch']
  #allocation2 [shape = 's32[1]{0:T(128)S(6)}', space=smem, size = 0x200, scoped, tag = 'scoped memory for tpu_custom_call.1']
  #allocation3 [shape = 'f32[1,1]{1,0:T(1,128)S(1)}', space=vmem, size = 0x200, scoped, tag = 'scoped memory for tpu_custom_call.1']
  %s0 = inlined_call_operand.<no memory space> [shape: s32[1], index: 0, kind: input, shape index: {}]
  %s1 = inlined_call_operand.vmem [shape: f32[24,8], index: 1, kind: input, shape index: {}]
  %s2 = inlined_call_operand.vmem [shape: f32[1,64], index: 2, kind: input, shape index: {}]
  %s3 = inlined_call_operand.vmem [shape: f32[64,32], index: 3, kind: input, shape index: {}]
  %s4 = inlined_call_operand.vmem [shape: f32[1,32], index: 4, kind: input, shape index: {}]
  %s5 = inlined_call_operand.vmem [shape: f32[8,64], index: 5, kind: input, shape index: {}]
  %s6 = inlined_call_operand.vmem [shape: f32[32,64], index: 6, kind: input, shape index: {}]
  %s7 = inlined_call_operand.vmem [shape: f32[1,64], index: 7, kind: input, shape index: {}]
  %s8 = inlined_call_operand.vmem [shape: f32[64,32], index: 8, kind: input, shape index: {}]
  %s9 = inlined_call_operand.vmem [shape: f32[1,32], index: 9, kind: input, shape index: {}]
  %s10 = inlined_call_operand.vmem [shape: f32[1,32], index: 10, kind: input, shape index: {}]
  %s11 = inlined_call_operand.<no memory space> [shape: f32[1,1], index: 11, kind: input, shape index: {}]
  %s12 = inlined_call_operand.hbm [shape: f32[1,1], index: 12, kind: output, shape index: {}]
  %s13 = sld [smem:[#allocation0]]
  $region58: #{tpu_custom_call.1} parent=0
    _
  %s15 = ssub.s32 1, %s13
  %s16 = scalar_select 0, %s15, %s13
  %17 = sst [smem:[#allocation2]] %s0
  %v18 = vstv %s11
  %19 = vst [vmem:[#allocation3] sm:$0x1] %v18
  $region1: #{tpu_custom_call.1} parent=0
    #allocation4 [shape = 'u8[512]{0}', space=vmem, size = 0x400, scoped, tag = 'output window, operand 0, single buffered']
    #allocation5 [shape = 's32[1]{0}', space=sflag, size = 0x4, scoped, tag = 'scoped memory for tpu_custom_call.1']
    %20 = vsyncpa [#allocation5], 0
    // Predicated region
    $region2: #{tpu_custom_call.1} parent=1 // pred_check
      _
    $region3: #{tpu_custom_call.1} parent=1 // pred_check_branch
      %22 = sbr.rel (0) target = $region5
    $region4: #{tpu_custom_call.1} parent=1 // pred_region
      _
    $region5: #{tpu_custom_call.1} parent=1 // pred_fallthru
      _
    // Predicated region
    $region6: #{tpu_custom_call.1} parent=1 // pred_check
      _
    $region7: #{tpu_custom_call.1} parent=1 // pred_check_branch
      %24 = sbr.rel (0) target = $region9
    $region8: #{tpu_custom_call.1} parent=1 // pred_region
      _
    $region9: #{tpu_custom_call.1} parent=1 // pred_fallthru
      _
    // Predicated region
    $region10: #{tpu_custom_call.1} parent=1 // pred_check
      _
    $region11: #{tpu_custom_call.1} parent=1 // pred_check_branch
      %26 = sbr.rel (0) target = $region13
    $region12: #{tpu_custom_call.1} parent=1 // pred_region
      _
    $region13: #{tpu_custom_call.1} parent=1 // pred_fallthru
      _
    // Predicated region
    $region14: #{tpu_custom_call.1} parent=1 // pred_check
      _
    $region15: #{tpu_custom_call.1} parent=1 // pred_check_branch
      %28 = sbr.rel (0) target = $region17
    $region16: #{tpu_custom_call.1} parent=1 // pred_region
      _
    $region17: #{tpu_custom_call.1} parent=1 // pred_fallthru
      _
    // Predicated region
    $region18: #{tpu_custom_call.1} parent=1 // pred_check
      _
    $region19: #{tpu_custom_call.1} parent=1 // pred_check_branch
      %30 = sbr.rel (0) target = $region21
    $region20: #{tpu_custom_call.1} parent=1 // pred_region
      _
    $region21: #{tpu_custom_call.1} parent=1 // pred_fallthru
      _
    // Predicated region
    $region22: #{tpu_custom_call.1} parent=1 // pred_check
      _
    $region23: #{tpu_custom_call.1} parent=1 // pred_check_branch
      %32 = sbr.rel (0) target = $region25
    $region24: #{tpu_custom_call.1} parent=1 // pred_region
      _
    $region25: #{tpu_custom_call.1} parent=1 // pred_fallthru
      _
    // Predicated region
    $region26: #{tpu_custom_call.1} parent=1 // pred_check
      _
    $region27: #{tpu_custom_call.1} parent=1 // pred_check_branch
      %34 = sbr.rel (0) target = $region29
    $region28: #{tpu_custom_call.1} parent=1 // pred_region
      _
    $region29: #{tpu_custom_call.1} parent=1 // pred_fallthru
      _
    // Predicated region
    $region30: #{tpu_custom_call.1} parent=1 // pred_check
      _
    $region31: #{tpu_custom_call.1} parent=1 // pred_check_branch
      %36 = sbr.rel (0) target = $region33
    $region32: #{tpu_custom_call.1} parent=1 // pred_region
      _
    $region33: #{tpu_custom_call.1} parent=1 // pred_fallthru
      _
    // Predicated region
    $region34: #{tpu_custom_call.1} parent=1 // pred_check
      _
    $region35: #{tpu_custom_call.1} parent=1 // pred_check_branch
      %38 = sbr.rel (0) target = $region37
    $region36: #{tpu_custom_call.1} parent=1 // pred_region
      _
    $region37: #{tpu_custom_call.1} parent=1 // pred_fallthru
      _
    // Predicated region
    $region38: #{tpu_custom_call.1} parent=1 // pred_check
      _
    $region39: #{tpu_custom_call.1} parent=1 // pred_check_branch
      %40 = sbr.rel (0) target = $region41
    $region40: #{tpu_custom_call.1} parent=1 // pred_region
      _
    $region41: #{tpu_custom_call.1} parent=1 // pred_fallthru
      _
    // Predicated region
    $region42: #{tpu_custom_call.1} parent=1 // pred_check
      _
    $region43: #{tpu_custom_call.1} parent=1 // pred_check_branch
      %42 = sbr.rel (0) target = $region45
    $region44: #{tpu_custom_call.1} parent=1 // pred_region
      _
    $region45: #{tpu_custom_call.1} parent=1 // pred_fallthru
      _
    // Predicated region
    $region46: #{tpu_custom_call.1} parent=1 // pred_check
      _
    $region47: #{tpu_custom_call.1} parent=1 // pred_check_branch
      %44 = sbr.rel (0) target = $region49
    $region48: #{tpu_custom_call.1} parent=1 // pred_region
      _
    $region49: #{tpu_custom_call.1} parent=1 // pred_fallthru
      _
    %s45 = sld [smem:[#allocation2]]
    %s46 = scalar_lea.vmem %s1, %s45
    %v47 = vld [vmem:[%s46] sm:$0x1]
    %v48 = vld [vmem:[%s2] sm:$0x1]
    %v49 = vld [vmem:[%s3] sm:$0xff]
    %v50 = vld [vmem:[%s3 + $0x8] sm:$0xff]
    %v51 = vld [vmem:[%s3 + $0x10] sm:$0xff]
    %v52 = vld [vmem:[%s3 + $0x18] sm:$0xff]
    %v53 = vld [vmem:[%s3 + $0x20] sm:$0xff]
    %v54 = vld [vmem:[%s3 + $0x28] sm:$0xff]
    %v55 = vld [vmem:[%s3 + $0x30] sm:$0xff]
    %v56 = vld [vmem:[%s3 + $0x38] sm:$0xff]
    %v57 = vld [vmem:[%s4] sm:$0x1]
    %vm58 = vcmask 523264
    %v60 = vsel %vm58, %v48, 0
    %62 = vmatprep.subr.mxu0 0.0
    %63 = vmatpush1.msra.mxu0 %v49
    %64 = vmatprep.subr.mxu0 0.0
    %65 = vmatpush1.msra.mxu0 %v50
    %66 = vmatprep.subr.mxu0 0.0
    %67 = vmatpush1.msra.mxu0 %v51
    %68 = vmatprep.subr.mxu0 0.0
    %69 = vmatpush1.msra.mxu0 %v52
    %70 = vmatprep.subr.mxu0 0.0
    %71 = vmatpush1.msra.mxu0 %v53
    %72 = vmatprep.subr.mxu0 0.0
    %73 = vmatpush1.msra.mxu0 %v54
    %74 = vmatprep.subr.mxu0 0.0
    %75 = vmatpush1.msra.mxu0 %v55
    %76 = vmatprep.subr.mxu0 0.0
    %77 = vmatpush1.msra.mxu0 %v56
    %78 = vmatprep.subr.mxu0 0.0
    %79 = vmatpush1.msra.mxu0 0.0
    %80 = vmatprep.subr.mxu0 0.0
    %81 = vmatpush1.msra.mxu0 0.0
    %82 = vmatprep.subr.mxu0 0.0
    %83 = vmatpush1.msra.mxu0 0.0
    %84 = vmatprep.subr.mxu0 0.0
    %85 = vmatpush1.msra.mxu0 0.0
    %86 = vmatprep.subr.mxu0 0.0
    %87 = vmatpush1.msra.mxu0 0.0
    %88 = vmatprep.subr.mxu0 0.0
    %89 = vmatpush1.msra.mxu0 0.0
    %90 = vmatprep.subr.mxu0 0.0
    %91 = vmatpush1.msra.mxu0 0.0
    %92 = vmatprep.subr.mxu0 0.0
    %93 = vmatpush1.msra.mxu0 0.0
    %94 = vmatprep.subr.mxu0 0.0
    %95 = vmatpush1.msra.mxu0 0.0
    %96 = vmatprep.subr.mxu0 0.0
    %97 = vmatpush1.msra.mxu0 0.0
    %98 = vmatprep.subr.mxu0 0.0
    %99 = vmatpush1.msra.mxu0 0.0
    %100 = vmatprep.subr.mxu0 0.0
    %101 = vmatpush1.msra.mxu0 0.0
    %102 = vmatprep.subr.mxu0 0.0
    %103 = vmatpush1.msra.mxu0 0.0
    %104 = vmatprep.subr.mxu0 0.0
    %105 = vmatpush1.msra.mxu0 0.0
    %106 = vmatprep.subr.mxu0 0.0
    %107 = vmatpush1.msra.mxu0 0.0
    %108 = vmatprep.subr.mxu0 0.0
    %109 = vmatpush1.msra.mxu0 0.0
    %110 = vmatprep.subr.mxu0 0.0
    %111 = vmatpush1.msra.mxu0 0.0
    %112 = vmatprep.subr.mxu0 0.0
    %113 = vmatpush1.msra.mxu0 0.0
    %114 = vmatprep.subr.mxu0 0.0
    %115 = vmatpush1.msra.mxu0 0.0
    %116 = vmatprep.subr.mxu0 0.0
    %117 = vmatpush1.msra.mxu0 0.0
    %118 = vmatprep.subr.mxu0 0.0
    %119 = vmatpush1.msra.mxu0 0.0
    %120 = vmatprep.subr.mxu0 0.0
    %121 = vmatpush1.msra.mxu0 0.0
    %122 = vmatprep.subr.mxu0 0.0
    %123 = vmatpush1.msra.mxu0 0.0
    %124 = vmatprep.subr.mxu0 0.0
    %125 = vmatpush1.msra.mxu0 0.0
    %126 = vmatprep.mubr.f32.mxu0 0.0
    %127 = vmatmul.mubr.f32.gmra.mrb[0].mxu0 %v60
    %v128 = vpop.f32.mrb[0].mxu0
    %v129 = vadd.f32 %v57, %v128
    %v130 = vpop.f32.mrb[0].mxu0
    %131 = vdwg.mxu0
    %v132 = vld [vmem:[%s5] sm:$0xff]
    %v133 = vld [vmem:[%s6] sm:$0xff]
    %v134 = vld [vmem:[%s6 + $0x8] sm:$0xff]
    %v135 = vld [vmem:[%s6 + $0x10] sm:$0xff]
    %v136 = vld [vmem:[%s6 + $0x18] sm:$0xff]
    %vm137 = vcmask 261120
    %v139 = vsel %vm137, %v129, 0
    %141 = vmatprep.subr.mxu0 0.0
    %142 = vmatpush1.msra.mxu0 %v133
    %143 = vmatprep.subr.mxu0 0.0
    %144 = vmatpush1.msra.mxu0 %v134
    %145 = vmatprep.subr.mxu0 0.0
    %146 = vmatpush1.msra.mxu0 %v135
    %147 = vmatprep.subr.mxu0 0.0
    %148 = vmatpush1.msra.mxu0 %v136
    %149 = vmatprep.subr.mxu0 0.0
    %150 = vmatpush1.msra.mxu0 0.0
    %151 = vmatprep.subr.mxu0 0.0
    %152 = vmatpush1.msra.mxu0 0.0
    %153 = vmatprep.subr.mxu0 0.0
    %154 = vmatpush1.msra.mxu0 0.0
    %155 = vmatprep.subr.mxu0 0.0
    %156 = vmatpush1.msra.mxu0 0.0
    %157 = vmatprep.subr.mxu0 0.0
    %158 = vmatpush1.msra.mxu0 0.0
    %159 = vmatprep.subr.mxu0 0.0
    %160 = vmatpush1.msra.mxu0 0.0
    %161 = vmatprep.subr.mxu0 0.0
    %162 = vmatpush1.msra.mxu0 0.0
    %163 = vmatprep.subr.mxu0 0.0
    %164 = vmatpush1.msra.mxu0 0.0
    %165 = vmatprep.subr.mxu0 0.0
    %166 = vmatpush1.msra.mxu0 0.0
    %167 = vmatprep.subr.mxu0 0.0
    %168 = vmatpush1.msra.mxu0 0.0
    %169 = vmatprep.subr.mxu0 0.0
    %170 = vmatpush1.msra.mxu0 0.0
    %171 = vmatprep.subr.mxu0 0.0
    %172 = vmatpush1.msra.mxu0 0.0
    %173 = vmatprep.subr.mxu0 0.0
    %174 = vmatpush1.msra.mxu0 0.0
    %175 = vmatprep.subr.mxu0 0.0
    %176 = vmatpush1.msra.mxu0 0.0
    %177 = vmatprep.subr.mxu0 0.0
    %178 = vmatpush1.msra.mxu0 0.0
    %179 = vmatprep.subr.mxu0 0.0
    %180 = vmatpush1.msra.mxu0 0.0
    %181 = vmatprep.subr.mxu0 0.0
    %182 = vmatpush1.msra.mxu0 0.0
    %183 = vmatprep.subr.mxu0 0.0
    %184 = vmatpush1.msra.mxu0 0.0
    %185 = vmatprep.subr.mxu0 0.0
    %186 = vmatpush1.msra.mxu0 0.0
    %187 = vmatprep.subr.mxu0 0.0
    %188 = vmatpush1.msra.mxu0 0.0
    %189 = vmatprep.subr.mxu0 0.0
    %190 = vmatpush1.msra.mxu0 0.0
    %191 = vmatprep.subr.mxu0 0.0
    %192 = vmatpush1.msra.mxu0 0.0
    %193 = vmatprep.subr.mxu0 0.0
    %194 = vmatpush1.msra.mxu0 0.0
    %195 = vmatprep.subr.mxu0 0.0
    %196 = vmatpush1.msra.mxu0 0.0
    %197 = vmatprep.subr.mxu0 0.0
    %198 = vmatpush1.msra.mxu0 0.0
    %199 = vmatprep.subr.mxu0 0.0
    %200 = vmatpush1.msra.mxu0 0.0
    %201 = vmatprep.subr.mxu0 0.0
    %202 = vmatpush1.msra.mxu0 0.0
    %203 = vmatprep.subr.mxu0 0.0
    %204 = vmatpush1.msra.mxu0 0.0
    %205 = vmatprep.mubr.f32.mxu0 0.0
    %206 = vmatmul.mubr.f32.gmra.mrb[0].mxu0 %v139
    %v207 = vpop.f32.mrb[0].mxu0
    %v208 = vadd.f32 0.0, %v207
    %v209 = vpop.f32.mrb[0].mxu0
    %210 = vdwg.mxu0
    %vm211 = vcmask 64512
    %v213 = vsel %vm211, %v47, 0
    %215 = vmatprep.subr.mxu0 0.0
    %216 = vmatpush1.msra.mxu0 %v132
    %217 = vmatprep.subr.mxu0 0.0
    %218 = vmatpush1.msra.mxu0 0.0
    %219 = vmatprep.subr.mxu0 0.0
    %220 = vmatpush1.msra.mxu0 0.0
    %221 = vmatprep.subr.mxu0 0.0
    %222 = vmatpush1.msra.mxu0 0.0
    %223 = vmatprep.subr.mxu0 0.0
    %224 = vmatpush1.msra.mxu0 0.0
    %225 = vmatprep.subr.mxu0 0.0
    %226 = vmatpush1.msra.mxu0 0.0
    %227 = vmatprep.subr.mxu0 0.0
    %228 = vmatpush1.msra.mxu0 0.0
    %229 = vmatprep.subr.mxu0 0.0
    %230 = vmatpush1.msra.mxu0 0.0
    %231 = vmatprep.subr.mxu0 0.0
    %232 = vmatpush1.msra.mxu0 0.0
    %233 = vmatprep.subr.mxu0 0.0
    %234 = vmatpush1.msra.mxu0 0.0
    %235 = vmatprep.subr.mxu0 0.0
    %236 = vmatpush1.msra.mxu0 0.0
    %237 = vmatprep.subr.mxu0 0.0
    %238 = vmatpush1.msra.mxu0 0.0
    %239 = vmatprep.subr.mxu0 0.0
    %240 = vmatpush1.msra.mxu0 0.0
    %241 = vmatprep.subr.mxu0 0.0
    %242 = vmatpush1.msra.mxu0 0.0
    %243 = vmatprep.subr.mxu0 0.0
    %244 = vmatpush1.msra.mxu0 0.0
    %245 = vmatprep.subr.mxu0 0.0
    %246 = vmatpush1.msra.mxu0 0.0
    %247 = vmatprep.subr.mxu0 0.0
    %248 = vmatpush1.msra.mxu0 0.0
    %249 = vmatprep.subr.mxu0 0.0
    %250 = vmatpush1.msra.mxu0 0.0
    %251 = vmatprep.subr.mxu0 0.0
    %252 = vmatpush1.msra.mxu0 0.0
    %253 = vmatprep.subr.mxu0 0.0
    %254 = vmatpush1.msra.mxu0 0.0
    %255 = vmatprep.subr.mxu0 0.0
    %256 = vmatpush1.msra.mxu0 0.0
    %257 = vmatprep.subr.mxu0 0.0
    %258 = vmatpush1.msra.mxu0 0.0
    %259 = vmatprep.subr.mxu0 0.0
    %260 = vmatpush1.msra.mxu0 0.0
    %261 = vmatprep.subr.mxu0 0.0
    %262 = vmatpush1.msra.mxu0 0.0
    %263 = vmatprep.subr.mxu0 0.0
    %264 = vmatpush1.msra.mxu0 0.0
    %265 = vmatprep.subr.mxu0 0.0
    %266 = vmatpush1.msra.mxu0 0.0
    %267 = vmatprep.subr.mxu0 0.0
    %268 = vmatpush1.msra.mxu0 0.0
    %269 = vmatprep.subr.mxu0 0.0
    %270 = vmatpush1.msra.mxu0 0.0
    %271 = vmatprep.subr.mxu0 0.0
    %272 = vmatpush1.msra.mxu0 0.0
    %273 = vmatprep.subr.mxu0 0.0
    %274 = vmatpush1.msra.mxu0 0.0
    %275 = vmatprep.subr.mxu0 0.0
    %276 = vmatpush1.msra.mxu0 0.0
    %277 = vmatprep.subr.mxu0 0.0
    %278 = vmatpush1.msra.mxu0 0.0
    %279 = vmatprep.mubr.f32.mxu0 0.0
    %280 = vmatmul.mubr.f32.gmra.mrb[0].mxu0 %v213
    %v281 = vpop.f32.mrb[0].mxu0
    %v282 = vadd.f32 %v208, %v281
    %v283 = vpop.f32.mrb[0].mxu0
    %284 = vdwg.mxu0
    %v285 = vld [vmem:[%s7] sm:$0x1]
    %v286 = vadd.f32 %v282, %v285
    %v287 = vmax.f32 %v286, 0.0
    %v288 = vld [vmem:[%s8] sm:$0xff]
    %v289 = vld [vmem:[%s8 + $0x8] sm:$0xff]
    %v290 = vld [vmem:[%s8 + $0x10] sm:$0xff]
    %v291 = vld [vmem:[%s8 + $0x18] sm:$0xff]
    %v292 = vld [vmem:[%s8 + $0x20] sm:$0xff]
    %v293 = vld [vmem:[%s8 + $0x28] sm:$0xff]
    %v294 = vld [vmem:[%s8 + $0x30] sm:$0xff]
    %v295 = vld [vmem:[%s8 + $0x38] sm:$0xff]
    %v296 = vld [vmem:[%s9] sm:$0x1]
    %v298 = vsel %vm58, %v287, 0
    %300 = vmatprep.subr.mxu0 0.0
    %301 = vmatpush1.msra.mxu0 %v288
    %302 = vmatprep.subr.mxu0 0.0
    %303 = vmatpush1.msra.mxu0 %v289
    %304 = vmatprep.subr.mxu0 0.0
    %305 = vmatpush1.msra.mxu0 %v290
    %306 = vmatprep.subr.mxu0 0.0
    %307 = vmatpush1.msra.mxu0 %v291
    %308 = vmatprep.subr.mxu0 0.0
    %309 = vmatpush1.msra.mxu0 %v292
    %310 = vmatprep.subr.mxu0 0.0
    %311 = vmatpush1.msra.mxu0 %v293
    %312 = vmatprep.subr.mxu0 0.0
    %313 = vmatpush1.msra.mxu0 %v294
    %314 = vmatprep.subr.mxu0 0.0
    %315 = vmatpush1.msra.mxu0 %v295
    %316 = vmatprep.subr.mxu0 0.0
    %317 = vmatpush1.msra.mxu0 0.0
    %318 = vmatprep.subr.mxu0 0.0
    %319 = vmatpush1.msra.mxu0 0.0
    %320 = vmatprep.subr.mxu0 0.0
    %321 = vmatpush1.msra.mxu0 0.0
    %322 = vmatprep.subr.mxu0 0.0
    %323 = vmatpush1.msra.mxu0 0.0
    %324 = vmatprep.subr.mxu0 0.0
    %325 = vmatpush1.msra.mxu0 0.0
    %326 = vmatprep.subr.mxu0 0.0
    %327 = vmatpush1.msra.mxu0 0.0
    %328 = vmatprep.subr.mxu0 0.0
    %329 = vmatpush1.msra.mxu0 0.0
    %330 = vmatprep.subr.mxu0 0.0
    %331 = vmatpush1.msra.mxu0 0.0
    %332 = vmatprep.subr.mxu0 0.0
    %333 = vmatpush1.msra.mxu0 0.0
    %334 = vmatprep.subr.mxu0 0.0
    %335 = vmatpush1.msra.mxu0 0.0
    %336 = vmatprep.subr.mxu0 0.0
    %337 = vmatpush1.msra.mxu0 0.0
    %338 = vmatprep.subr.mxu0 0.0
    %339 = vmatpush1.msra.mxu0 0.0
    %340 = vmatprep.subr.mxu0 0.0
    %341 = vmatpush1.msra.mxu0 0.0
    %342 = vmatprep.subr.mxu0 0.0
    %343 = vmatpush1.msra.mxu0 0.0
    %344 = vmatprep.subr.mxu0 0.0
    %345 = vmatpush1.msra.mxu0 0.0
    %346 = vmatprep.subr.mxu0 0.0
    %347 = vmatpush1.msra.mxu0 0.0
    %348 = vmatprep.subr.mxu0 0.0
    %349 = vmatpush1.msra.mxu0 0.0
    %350 = vmatprep.subr.mxu0 0.0
    %351 = vmatpush1.msra.mxu0 0.0
    %352 = vmatprep.subr.mxu0 0.0
    %353 = vmatpush1.msra.mxu0 0.0
    %354 = vmatprep.subr.mxu0 0.0
    %355 = vmatpush1.msra.mxu0 0.0
    %356 = vmatprep.subr.mxu0 0.0
    %357 = vmatpush1.msra.mxu0 0.0
    %358 = vmatprep.subr.mxu0 0.0
    %359 = vmatpush1.msra.mxu0 0.0
    %360 = vmatprep.subr.mxu0 0.0
    %361 = vmatpush1.msra.mxu0 0.0
    %362 = vmatprep.subr.mxu0 0.0
    %363 = vmatpush1.msra.mxu0 0.0
    %364 = vmatprep.mubr.f32.mxu0 0.0
    %365 = vmatmul.mubr.f32.gmra.mrb[0].mxu0 %v298
    %v366 = vpop.f32.mrb[0].mxu0
    %v367 = vadd.f32 %v296, %v366
    %v368 = vpop.f32.mrb[0].mxu0
    %369 = vdwg.mxu0
    %v370 = vmax.f32 %v367, 0.0
    %v371 = vld [vmem:[%s10] sm:$0x1]
    %v372 = vmul.f32 %v370, %v371
    %vm373 = vcmask 253952
    %v374 = vsel %vm373, %v372, 0.0
    %375 = vadd.xlane.f32.xlu0 %v374
    %v376 = vpop.xlane.xlu0 %375
    %v377 = vld [vmem:[#allocation3] sm:$0x1]
    %v378 = vadd.f32 %v376, %v377
    %v379 = vmax.f32 %v378, 0.0
    %vm380 = vcmask 0
    %381 = vst.msk [vmem:[#allocation4] sm:$0x1] %vm380, %v379
    // Predicated region
    $region50: #{tpu_custom_call.1} parent=1 // pred_check
      _
    $region51: #{tpu_custom_call.1} parent=1 // pred_check_branch
      %383 = sbr.rel (0) target = $region53
    $region52: #{tpu_custom_call.1} parent=1 // pred_region
      %s385 = ssub.s32 16, 16
      %386 = vsyncadd [#allocation5], %s385
      %s388 = sshll.u32 [#allocation4], 4
      %s389 = int_to_ptr.vmem [resolvable:$true] %s388
      %391 = dma.vmem_to_hbm [thread:$0]  %s389, 16, %s12, [#allocation5]
    $region53: #{tpu_custom_call.1} parent=1 // pred_fallthru
      _
    // Predicated region
    $region54: #{tpu_custom_call.1} parent=1 // pred_check
      _
    $region55: #{tpu_custom_call.1} parent=1 // pred_check_branch
      %393 = sbr.rel (0) target = $region57
    $region56: #{tpu_custom_call.1} parent=1 // pred_region
      %394 = dma.done [#allocation5], 16
    $region57: #{tpu_custom_call.1} parent=1 // pred_fallthru
      _
    %395 = vsyncpa [#allocation5], 1

</llo_original>
